<compile_context>
chip_gen: v5e
topology: v5e:2x2
jax: 0.10.0
libtpu: 0.0.40
codegen_flags: <defaults>
</compile_context>

<pallas_src>
import functools

import jax
import jax.numpy as jnp
from jax import lax
from jax.experimental import pallas as pl
from jax.experimental.pallas import tpu as pltpu


def _myloss_kernel(logits_ref, targets_ref, out_ref, *, n_true, r1, r2):
    """One (TN, C) row tile: accumulate r1*sum(l1) + r2*sum(ce) into out_ref."""
    p = pl.program_id(0)                 # parallel part (megacore split on v7x)
    i = pl.program_id(1)                 # serial step within this part
    steps = pl.num_programs(1)

    @pl.when(i == 0)
    def _init():
        out_ref[...] = jnp.zeros_like(out_ref)

    x = logits_ref[...].astype(jnp.float32)      # (TN, C), upcast in-kernel
    t = targets_ref[...]                         # (TN, 1) int32
    tn, c = x.shape

    # Row-validity mask (uses the UNCLAMPED tile index, so duplicated /
    # partially out-of-bounds tiles contribute exactly zero).
    tile_idx = p * steps + i
    row = tile_idx * tn + lax.broadcasted_iota(jnp.int32, (tn, 1), 0)
    valid = row < n_true                         # (TN, 1) bool

    # Numerically stable log-sum-exp; the softmax is never materialized.
    m = jnp.max(x, axis=1, keepdims=True)                       # (TN, 1)
    s = jnp.sum(jnp.exp(x - m), axis=1, keepdims=True)          # (TN, 1)
    log_z = m + jnp.log(s)                                      # (TN, 1)

    # x[target] via iota compare + masked sum (one pass over the tile).
    class_ids = lax.broadcasted_iota(jnp.int32, (tn, c), 1)
    x_t = jnp.sum(jnp.where(class_ids == t, x, 0.0),
                  axis=1, keepdims=True)                        # (TN, 1)

    # Closed form: sum_c |softmax - onehot| == 2 * (1 - p_target).
    p_t = jnp.exp(x_t - log_z)                                  # (TN, 1)
    d = (2.0 / c) * (1.0 - p_t)                                 # mean over C
    l1 = jnp.exp(d + d * d)                                     # loss1 term
    ce = log_z - x_t                                            # CE term

    # jnp.where (not multiply-by-0) so NaN/Inf from padded garbage rows is
    # fully suppressed.
    contrib = jnp.where(valid, r1 * l1 + r2 * ce, 0.0)          # (TN, 1)
    out_ref[...] += jnp.sum(contrib, axis=0, keepdims=True)     # (1, 1)


def my_loss(inputs, targets, r1=1.0, r2=1.0, *, num_parts=2, max_block_rows=1024):
    """inputs: (N, C) float logits (f32 or bf16), targets: (N,) int class ids."""
    n, c = inputs.shape
    targets_2d = targets.astype(jnp.int32).reshape(n, 1)
    itemsize = jnp.dtype(inputs.dtype).itemsize

    # Row tile sized for ~4 MiB of logits per buffer (double-buffered by
    # Pallas -> ~8 MiB), comfortably within scoped VMEM on v5e/v6e/v7x.
    budget = 4 * 1024 * 1024
    tn_cap = max(8, min(max_block_rows,
                        (budget // max(1, c * itemsize)) // 8 * 8))
    tn = min(tn_cap, ((n + 7) // 8) * 8)
    total_tiles = pl.cdiv(n, tn)
    num_parts = max(1, min(num_parts, total_tiles))
    steps = pl.cdiv(total_tiles, num_parts)
    last_tile = total_tiles - 1

    kernel = functools.partial(_myloss_kernel, n_true=n,
                               r1=float(r1), r2=float(r2))

    # Clamp fully out-of-bounds tile indices (ragged split across parts) so
    # every DMA stays in bounds; the kernel masks those rows out anyway.
    def row_map(p, i):
        return (jnp.minimum(p * steps + i, last_tile), 0)

    # TODO(synk): for vocab-scale C, add a second grid axis over C with an
    # online log-sum-exp carry (running m, s, x_t in scratch).
    partials = pl.pallas_call(
        kernel,
        out_shape=jax.ShapeDtypeStruct((num_parts, 1), jnp.float32),
        grid=(num_parts, steps),
        in_specs=[
            pl.BlockSpec((tn, c), row_map),
            pl.BlockSpec((tn, 1), row_map),
        ],
        out_specs=pl.BlockSpec((1, 1), lambda p, i: (p, 0)),
        compiler_params=pltpu.CompilerParams(
            dimension_semantics=("parallel", "arbitrary"),
        ),
        cost_estimate=pl.CostEstimate(
            flops=6 * n * c,
            transcendentals=n * (c + 3),
            bytes_accessed=n * c * itemsize + n * 4 + num_parts * 4,
        ),
    )(inputs, targets_2d)

    # Both losses are means over the same N; r1/r2 were folded per row.
    return jnp.sum(partials) / jnp.float32(n)


def _reference(inputs, targets, r1=1.0, r2=1.0):
    # Pure-JAX reference of the PyTorch forward, for sanity checking.
    n, c = inputs.shape
    xf = inputs.astype(jnp.float32)
    onehot = jax.nn.one_hot(targets, c, dtype=jnp.float32)
    p = jax.nn.softmax(xf, axis=1)
    d = jnp.mean(jnp.abs(p - onehot), axis=1)
    loss1 = jnp.mean(jnp.exp(d + d * d))
    logp = jax.nn.log_softmax(xf, axis=1)
    ce = -jnp.mean(jnp.sum(onehot * logp, axis=1))
    return r1 * loss1 + r2 * ce


if __name__ == "__main__":
    key = jax.random.PRNGKey(0)
    k1, k2, k3, k4, k5, k6 = jax.random.split(key, 6)

    # Case 1: small, tile-aligned (batch, classes).
    N1, C1 = 8, 32
    logits1 = jax.random.normal(k1, (N1, C1), dtype=jnp.float32)
    targets1 = jax.random.randint(k2, (N1,), 0, C1, dtype=jnp.int32)
    out1 = jax.block_until_ready(my_loss(logits1, targets1, r1=1.0, r2=1.0))
    ref1 = _reference(logits1, targets1, r1=1.0, r2=1.0)
    assert jnp.allclose(out1, ref1, rtol=1e-5, atol=1e-5), (out1, ref1)

    # Case 2: ragged N (partial last tile masking) and non-unit r1/r2.
    N2, C2 = 50, 24
    logits2 = jax.random.normal(k3, (N2, C2), dtype=jnp.float32)
    targets2 = jax.random.randint(k4, (N2,), 0, C2, dtype=jnp.int32)
    out2 = jax.block_until_ready(my_loss(logits2, targets2, r1=0.7, r2=1.3))
    ref2 = _reference(logits2, targets2, r1=0.7, r2=1.3)
    assert jnp.allclose(out2, ref2, rtol=1e-5, atol=1e-5), (out2, ref2)

    # Case 3: multi-tile, 2 parts, odd tile count -> exercises the clamped
    # fully-OOB tile and the partial last tile simultaneously.
    N3, C3 = 160, 128
    logits3 = jax.random.normal(k5, (N3, C3), dtype=jnp.float32)
    targets3 = jax.random.randint(k6, (N3,), 0, C3, dtype=jnp.int32)
    out3 = jax.block_until_ready(
        my_loss(logits3, targets3, r1=1.2, r2=0.8, max_block_rows=64))
    ref3 = _reference(logits3, targets3, r1=1.2, r2=0.8)
    assert jnp.allclose(out3, ref3, rtol=1e-5, atol=1e-5), (out3, ref3)

    print("KERNEL_OK")
</pallas_src>

<mosaic_0001>
module attributes {stable_mosaic.version = 11 : i64} {
  func.func @_myloss_kernel(%arg0: i32, %arg1: i32, %arg2: memref<8x32xf32, #tpu.memory_space<vmem>>, %arg3: memref<8x1xi32, #tpu.memory_space<vmem>>, %arg4: memref<1x1xf32, #tpu.memory_space<vmem>>) attributes {dimension_semantics = [#tpu.dimension_semantics<parallel>, #tpu.dimension_semantics<arbitrary>], iteration_bounds = array<i64: 1, 1>, scalar_prefetch = 0 : i64, scratch_operands = 0 : i64, tpu.core_type = #tpu.core_type<tc>, window_params = [{transform_indices = @transform_0, window_bounds = array<i64: 8, 32>}, {transform_indices = @transform_1, window_bounds = array<i64: 8, 1>}, {transform_indices = @transform_2, window_bounds = array<i64: 1, 1>}]} {
    %c0_i32 = arith.constant 0 : i32
    %0 = arith.cmpi eq, %arg1, %c0_i32 : i32
    %1 = arith.extui %0 : i1 to i32
    %c0_i32_0 = arith.constant 0 : i32
    %2 = arith.cmpi ne, %1, %c0_i32_0 : i32
    scf.if %2 {
      %cst_18 = arith.constant 0.000000e+00 : f32
      %51 = vector.broadcast %cst_18 : f32 to vector<1x1xf32>
      %c0_19 = arith.constant 0 : index
      %c0_20 = arith.constant 0 : index
      %52 = vector.load %arg4[%c0_19, %c0_20] : memref<1x1xf32, #tpu.memory_space<vmem>>, vector<1x1xf32>
      tpu.vector_store %arg4[%c0_19, %c0_20], %51 {strides = array<i32>} : memref<1x1xf32, #tpu.memory_space<vmem>>, vector<1x1xf32>,
    } else {
    }
    %c0 = arith.constant 0 : index
    %c0_1 = arith.constant 0 : index
    %3 = vector.load %arg2[%c0, %c0_1] : memref<8x32xf32, #tpu.memory_space<vmem>>, vector<8x32xf32>
    %c0_2 = arith.constant 0 : index
    %c0_3 = arith.constant 0 : index
    %4 = vector.load %arg3[%c0_2, %c0_3] : memref<8x1xi32, #tpu.memory_space<vmem>>, vector<8x1xi32>
    %c1_i32 = arith.constant 1 : i32
    %5 = arith.muli %arg0, %c1_i32 : i32
    %6 = arith.addi %5, %arg1 : i32
    %c8_i32 = arith.constant 8 : i32
    %7 = arith.muli %6, %c8_i32 : i32
    %8 = tpu.iota {dimensions = array<i32: 0>} : vector<8x1xi32>
    %9 = vector.broadcast %7 : i32 to vector<8x1xi32>
    %10 = arith.addi %9, %8 : vector<8x1xi32>
    %c8_i32_4 = arith.constant 8 : i32
    %11 = vector.broadcast %c8_i32_4 : i32 to vector<8x1xi32>
    %12 = arith.cmpi slt, %10, %11 : vector<8x1xi32>
    %cst = arith.constant dense<0xFF800000> : vector<8xf32>
    %13 = vector.multi_reduction <maximumf>, %3, %cst [1] : vector<8x32xf32> to vector<8xf32>
    %14 = vector.shape_cast %13 : vector<8xf32> to vector<8x1xf32>
    %15 = vector.broadcast %14 : vector<8x1xf32> to vector<8x32xf32>
    %16 = arith.subf %3, %15 : vector<8x32xf32>
    %17 = math.exp %16 : vector<8x32xf32>
    %cst_5 = arith.constant dense<0.000000e+00> : vector<8xf32>
    %18 = vector.multi_reduction <add>, %17, %cst_5 [1] : vector<8x32xf32> to vector<8xf32>
    %19 = vector.shape_cast %18 : vector<8xf32> to vector<8x1xf32>
    %20 = math.log %19 : vector<8x1xf32>
    %21 = arith.addf %14, %20 : vector<8x1xf32>
    %22 = tpu.iota {dimensions = array<i32: 1>} : vector<8x32xi32>
    %23 = vector.broadcast %4 : vector<8x1xi32> to vector<8x32xi32>
    %24 = arith.cmpi eq, %22, %23 : vector<8x32xi32>
    %cst_6 = arith.constant 0.000000e+00 : f32
    %25 = vector.broadcast %cst_6 : f32 to vector<8x32xf32>
    %26 = arith.select %24, %3, %25 : vector<8x32xi1>, vector<8x32xf32>
    %cst_7 = arith.constant dense<0.000000e+00> : vector<8xf32>
    %27 = vector.multi_reduction <add>, %26, %cst_7 [1] : vector<8x32xf32> to vector<8xf32>
    %28 = vector.shape_cast %27 : vector<8xf32> to vector<8x1xf32>
    %29 = arith.subf %28, %21 : vector<8x1xf32>
    %30 = math.exp %29 : vector<8x1xf32>
    %cst_8 = arith.constant 1.000000e+00 : f32
    %31 = vector.broadcast %cst_8 : f32 to vector<8x1xf32>
    %32 = arith.subf %31, %30 : vector<8x1xf32>
    %cst_9 = arith.constant 6.250000e-02 : f32
    %33 = vector.broadcast %cst_9 : f32 to vector<8x1xf32>
    %34 = arith.mulf %33, %32 : vector<8x1xf32>
    %35 = arith.mulf %34, %34 : vector<8x1xf32>
    %36 = arith.addf %34, %35 : vector<8x1xf32>
    %37 = math.exp %36 : vector<8x1xf32>
    %38 = arith.subf %21, %28 : vector<8x1xf32>
    %cst_10 = arith.constant 1.000000e+00 : f32
    %39 = vector.broadcast %cst_10 : f32 to vector<8x1xf32>
    %40 = arith.mulf %39, %37 : vector<8x1xf32>
    %cst_11 = arith.constant 1.000000e+00 : f32
    %41 = vector.broadcast %cst_11 : f32 to vector<8x1xf32>
    %42 = arith.mulf %41, %38 : vector<8x1xf32>
    %43 = arith.addf %40, %42 : vector<8x1xf32>
    %cst_12 = arith.constant 0.000000e+00 : f32
    %44 = vector.broadcast %cst_12 : f32 to vector<8x1xf32>
    %45 = arith.select %12, %43, %44 : vector<8x1xi1>, vector<8x1xf32>
    %c0_13 = arith.constant 0 : index
    %c0_14 = arith.constant 0 : index
    %46 = vector.load %arg4[%c0_13, %c0_14] : memref<1x1xf32, #tpu.memory_space<vmem>>, vector<1x1xf32>
    %cst_15 = arith.constant dense<0.000000e+00> : vector<1xf32>
    %47 = vector.multi_reduction <add>, %45, %cst_15 [0] : vector<8x1xf32> to vector<1xf32>
    %48 = vector.shape_cast %47 : vector<1xf32> to vector<1x1xf32>
    %49 = arith.addf %46, %48 : vector<1x1xf32>
    %c0_16 = arith.constant 0 : index
    %c0_17 = arith.constant 0 : index
    %50 = vector.load %arg4[%c0_16, %c0_17] : memref<1x1xf32, #tpu.memory_space<vmem>>, vector<1x1xf32>
    tpu.vector_store %arg4[%c0_16, %c0_17], %49 {strides = array<i32>} : memref<1x1xf32, #tpu.memory_space<vmem>>, vector<1x1xf32>,
    return
  }
  func.func @transform_0(%arg0: i32, %arg1: i32) -> (i32, i32) {
    %c1_i32 = arith.constant 1 : i32
    %0 = arith.muli %arg0, %c1_i32 : i32
    %1 = arith.addi %0, %arg1 : i32
    %c0_i32 = arith.constant 0 : i32
    %2 = arith.minsi %1, %c0_i32 : i32
    %c0_i32_0 = arith.constant 0 : i32
    %c0_i32_1 = arith.constant 0 : i32
    return %2, %c0_i32_0 : i32, i32
  }
  func.func @transform_1(%arg0: i32, %arg1: i32) -> (i32, i32) {
    %c1_i32 = arith.constant 1 : i32
    %0 = arith.muli %arg0, %c1_i32 : i32
    %1 = arith.addi %0, %arg1 : i32
    %c0_i32 = arith.constant 0 : i32
    %2 = arith.minsi %1, %c0_i32 : i32
    %c0_i32_0 = arith.constant 0 : i32
    %c0_i32_1 = arith.constant 0 : i32
    return %2, %c0_i32_0 : i32, i32
  }
  func.func @transform_2(%arg0: i32, %arg1: i32) -> (i32, i32) {
    %c0_i32 = arith.constant 0 : i32
    %c0_i32_0 = arith.constant 0 : i32
    return %arg0, %c0_i32 : i32, i32
  }
}

</mosaic_0001>

<llo_original>
// kernel: tpu_custom_call.1
$region0: #{tpu_custom_call.1}
  #allocation0 [shape = 'u32[]', space=smem, size = 0x4, offset = 0x4, fixed_abs, tag = 'smem constant byte address 0x4 - core index']
  #allocation1 [shape = 'u32[72,128]{1,0:T(1,128)}', space=vmem, size = 0x9000, scoped, tag = 'internal scratch']
  %s0 = inlined_call_operand.vmem [shape: f32[8,32], index: 0, kind: input, shape index: {}]
  %s1 = inlined_call_operand.vmem [shape: s32[8,1], index: 1, kind: input, shape index: {}]
  %s2 = inlined_call_operand.hbm [shape: f32[1,1], index: 2, kind: output, shape index: {}]
  %s3 = sld [smem:[#allocation0]]
  $region22: #{tpu_custom_call.1} parent=0
    _
  %s5 = ssub.s32 1, %s3
  %s6 = scalar_select 0, %s5, %s3
  $region1: #{tpu_custom_call.1} parent=0
    #allocation2 [shape = 'u8[512]{0}', space=vmem, size = 0x400, scoped, tag = 'output window, operand 0, single buffered']
    #allocation3 [shape = 's32[1]{0}', space=sflag, size = 0x4, scoped, tag = 'scoped memory for tpu_custom_call.1']
    %7 = vsyncpa [#allocation3], 0
    // Predicated region
    $region2: #{tpu_custom_call.1} parent=1 // pred_check
      _
    $region3: #{tpu_custom_call.1} parent=1 // pred_check_branch
      %9 = sbr.rel (0) target = $region5
    $region4: #{tpu_custom_call.1} parent=1 // pred_region
      %s10 = sadd.s32 0, 0
      %p11 = scmp.lt.s32.totalorder %s10, 0
      %s12 = scalar_select %p11, %s10, 0
      %p13 = scmp.lt.s32.totalorder %s12, 0
      %s14 = scalar_select %p13, %s12, 0
      %s15 = smul.addr %s14, 8
      %s16 = scalar_lea.vmem %s0, %s15
      %s17 = sadd.s32 0, 0
      %p18 = scmp.lt.s32.totalorder %s17, 0
      %s19 = scalar_select %p18, %s17, 0
    $region5: #{tpu_custom_call.1} parent=1 // pred_fallthru
      _
    // Predicated region
    $region6: #{tpu_custom_call.1} parent=1 // pred_check
      _
    $region7: #{tpu_custom_call.1} parent=1 // pred_check_branch
      %21 = sbr.rel (0) target = $region9
    $region8: #{tpu_custom_call.1} parent=1 // pred_region
      %s22 = sadd.s32 0, 0
      %p23 = scmp.lt.s32.totalorder %s22, 0
      %s24 = scalar_select %p23, %s22, 0
      %p25 = scmp.lt.s32.totalorder %s24, 0
      %s26 = scalar_select %p25, %s24, 0
      %s27 = smul.addr %s26, 8
      %s28 = scalar_lea.vmem %s1, %s27
      %s29 = sadd.s32 0, 0
      %p30 = scmp.lt.s32.totalorder %s29, 0
      %s31 = scalar_select %p30, %s29, 0
    $region9: #{tpu_custom_call.1} parent=1 // pred_fallthru
      _
    %s32 = sadd.s32 0, 0
    %p33 = scmp.lt.s32.totalorder %s32, 0
    %s34 = scalar_select %p33, %s32, 0
    %p35 = scmp.lt.s32.totalorder %s34, 0
    %s36 = scalar_select %p35, %s34, 0
    %s37 = smul.addr %s36, 8
    %s38 = scalar_lea.vmem %s0, %s37
    %s39 = sadd.s32 0, 0
    %p40 = scmp.lt.s32.totalorder %s39, 0
    %s41 = scalar_select %p40, %s39, 0
    %p42 = scmp.lt.s32.totalorder %s41, 0
    %s43 = scalar_select %p42, %s41, 0
    %s44 = smul.addr %s43, 8
    %s45 = scalar_lea.vmem %s1, %s44
    %s46 = sadd.s32 0, 0
    %p47 = scmp.lt.s32.totalorder %s46, 0
    %s48 = scalar_select %p47, %s46, 0
    %p49 = scmp.lt.s32.totalorder %s48, 0
    %s50 = scalar_select %p49, %s48, 0
    %s51 = smul.addr %s50, 8
    %s52 = scalar_lea.vmem %s0, %s51
    %s53 = sadd.s32 0, 0
    %p54 = scmp.lt.s32.totalorder %s53, 0
    %s55 = scalar_select %p54, %s53, 0
    %s56 = sadd.s32 0, 0
    %p57 = scmp.lt.s32.totalorder %s56, 0
    %s58 = scalar_select %p57, %s56, 0
    %p59 = scmp.lt.s32.totalorder %s58, 0
    %s60 = scalar_select %p59, %s58, 0
    %s61 = smul.addr %s60, 8
    %s62 = scalar_lea.vmem %s1, %s61
    %s63 = sadd.s32 0, 0
    %p64 = scmp.lt.s32.totalorder %s63, 0
    %s65 = scalar_select %p64, %s63, 0
    %p66 = scmp.eq.s32.totalorder 0, 0
    // Predicated region
    $region10: #{tpu_custom_call.1} parent=1 // pred_check
      %p67 = pneg %p66
    $region11: #{tpu_custom_call.1} parent=1 // pred_check_branch
      %69 = sbr.rel (%p67) target = $region13
    $region12: #{tpu_custom_call.1} parent=1 // pred_region
      %vm70 = vcmask 0
      %71 = vst.msk [vmem:[#allocation2] sm:$0x1] %vm70, 0.0
    $region13: #{tpu_custom_call.1} parent=1 // pred_fallthru
      _
    %v72 = vld [vmem:[%s52] sm:$0xff]
    %v73 = vld [vmem:[%s62] sm:$0xff]
    %s74 = sadd.s32 0, 0
    %s75 = smul.u32 %s74, 8
    %v76 = vlaneseq
    %v77 = vshrl.u32 %v76, 7
    %v78 = vstv %s75
    %v79 = vadd.s32 %v78, %v77
    %vm80 = vcmp.lt.s32.totalorder %v79, 8
    %vm81 = vcmask 261120
    %v82 = vsel %vm81, %v72, -inf
    %83 = vmax.xlane.f32.xlu0 %v82
    %v84 = vpop.xlane.xlu0 %83
    %v85 = vsub.f32 %v72, %v84
    %v86 = vmul.f32 %v85, 1.442695
    %v87 = vpow.pop %v86
    %v88 = vsel %vm81, %v87, 0.0
    %89 = vadd.xlane.f32.xlu0 %v88
    %v90 = vpop.xlane.xlu0 %89
    %v91 = vlog2.pop %v90
    %v92 = vmul.f32 %v91, 0.6931472
    %v93 = vadd.f32 %v84, %v92
    %v94 = vlaneseq
    %v95 = vand.u32 %v94, 127
    %96 = vset.pattern.permute.xlu0 0
    %97 = vperm.xlu0 %96, %v73
    %v98 = vpop.permute.xlu0 %97
    %vm99 = vcmp.eq.s32.totalorder %v95, %v98
    %v100 = vsel %vm99, %v72, 0.0
    %v101 = vsel %vm81, %v100, 0.0
    %102 = vadd.xlane.f32.xlu0 %v101
    %v103 = vpop.xlane.xlu0 %102
    %v104 = vsub.f32 %v103, %v93
    %v105 = vmul.f32 %v104, 1.442695
    %v106 = vpow.pop %v105
    %v107 = vsub.f32 1.0, %v106
    %v108 = vmul.f32 %v107, 0.0625
    %v109 = vmul.f32 %v108, %v108
    %v110 = vadd.f32 %v108, %v109
    %v111 = vmul.f32 %v110, 1.442695
    %v112 = vpow.pop %v111
    %v113 = vsub.f32 %v93, %v103
    %v114 = vadd.f32 %v112, %v113
    %v115 = vsel %vm80, %v114, 0.0
    %v116 = vld [vmem:[#allocation2] sm:$0x1]
    %v117 = vrot.slane %v115, 4
    %v118 = vadd.f32 %v115, %v117
    %v119 = vrot.slane %v118, 2
    %v120 = vadd.f32 %v118, %v119
    %v121 = vrot.slane %v120, 1
    %v122 = vadd.f32 %v120, %v121
    %v123 = vadd.f32 %v116, %v122
    %vm124 = vcmask 0
    %125 = vst.msk [vmem:[#allocation2] sm:$0x1] %vm124, %v123
    // Predicated region
    $region14: #{tpu_custom_call.1} parent=1 // pred_check
      _
    $region15: #{tpu_custom_call.1} parent=1 // pred_check_branch
      %127 = sbr.rel (0) target = $region17
    $region16: #{tpu_custom_call.1} parent=1 // pred_region
      %129 = vsyncadd [#allocation3], 0
      %s131 = sshll.u32 [#allocation2], 4
      %s132 = int_to_ptr.vmem [resolvable:$true] %s131
      %s133 = sshll.u32 %s2, 4
      %s134 = int_to_ptr.hbm [resolvable:$true] %s133
      %136 = dma.vmem_to_hbm [thread:$0]  %s132, 16, %s134, [#allocation3]
    $region17: #{tpu_custom_call.1} parent=1 // pred_fallthru
      _
    // Predicated region
    $region18: #{tpu_custom_call.1} parent=1 // pred_check
      _
    $region19: #{tpu_custom_call.1} parent=1 // pred_check_branch
      %138 = sbr.rel (0) target = $region21
    $region20: #{tpu_custom_call.1} parent=1 // pred_region
      %140 = dma.done [#allocation3], 16
    $region21: #{tpu_custom_call.1} parent=1 // pred_fallthru
      _
    %141 = vsyncpa [#allocation3], 1

</llo_original>
